<compile_context>
chip_gen: v7x
topology: tpu7x:2x2x1
jax: 0.10.0
libtpu: 0.0.40
codegen_flags: <defaults>
</compile_context>

<pallas_src>
import math

import jax
import jax.numpy as jnp
from jax import lax
from jax.experimental import pallas as pl
from jax.experimental.pallas import tpu as pltpu


def _attn_kernel(q_ref, k_ref, v_ref, o_ref, w_ref, acc_ref):
    """One (i, k) tile: W = (Q*scale) @ K^T ; acc += W @ V ; store O at last k."""
    k_idx = pl.program_id(1)

    @pl.when(k_idx == 0)
    def _init():
        acc_ref[...] = jnp.zeros_like(acc_ref)

    d = q_ref.shape[-1]
    scale = 1.0 / math.sqrt(d)
    # Fold the scale into Q: Nq*d multiplies per tile instead of Nq*Nk.
    q = q_ref[...] * scale

    # S = Q @ K^T without an explicit .T: contract the last dim of both
    # operands directly on the MXU (no XLU transpose / K-tile relayout).
    s = lax.dot_general(
        q, k_ref[...],
        dimension_numbers=(((1,), (1,)), ((), ())),
        preferred_element_type=jnp.float32)

    # Dropout == identity (eval mode); emit the attention weights tile.
    w_ref[...] = s.astype(w_ref.dtype)

    # Second matmul: scores cast to the value dtype (bf16 values -> full-rate
    # MXU; f32 values -> no-op cast), accumulate in f32.
    acc_ref[...] += jnp.dot(s.astype(v_ref.dtype), v_ref[...],
                            preferred_element_type=jnp.float32)

    @pl.when(k_idx == pl.num_programs(1) - 1)
    def _finalize():
        o_ref[...] = acc_ref[...].astype(o_ref.dtype)


def _pick_tile(n, candidates):
    """Largest candidate that evenly tiles `n`; fall back to the whole dim."""
    for t in candidates:
        if t <= n and n % t == 0:
            return t
    return n  # full-extent block is always a legal block shape


def dot_product_attention(queries, keys, values, dropout=0.0):
    """Forward pass of the PyTorch DotProductAttention module.

    Returns (output [Nq, dv], attention_weights [Nq, Nk]).
    """
    del dropout  # eval-mode / p=0: identity
    nq, d = queries.shape
    nk, dk = keys.shape
    nkv, dv = values.shape
    assert d == dk and nk == nkv

    # Tile the query / key axes; feature dims (d, dv) stay whole blocks.
    #   tq: sublane axis of Q/W/O tiles (multiple of 8, MXU-friendly 256/128).
    #   tk: lane axis of the W tile (multiple of 128 -> lane-dense stores).
    tq = _pick_tile(nq, (256, 128, 64, 32, 16, 8))
    tk = _pick_tile(nk, (512, 256, 128))
    grid = (nq // tq, nk // tk)

    out, attn_w = pl.pallas_call(
        _attn_kernel,
        out_shape=(
            jax.ShapeDtypeStruct((nq, dv), queries.dtype),
            jax.ShapeDtypeStruct((nq, nk), jnp.float32),
        ),
        grid=grid,
        in_specs=[
            pl.BlockSpec((tq, d), lambda i, k: (i, 0)),
            pl.BlockSpec((tk, d), lambda i, k: (k, 0)),
            pl.BlockSpec((tk, dv), lambda i, k: (k, 0)),
        ],
        out_specs=(
            # Output tile stays resident across the Nk reduction axis.
            pl.BlockSpec((tq, dv), lambda i, k: (i, 0)),
            # One weights tile per (i, k) grid point.
            pl.BlockSpec((tq, tk), lambda i, k: (i, k)),
        ),
        scratch_shapes=[pltpu.VMEM((tq, dv), jnp.float32)],
        compiler_params=pltpu.CompilerParams(
            dimension_semantics=("parallel", "arbitrary")),
    )(queries, keys, values)
    return out, attn_w


if __name__ == "__main__":
    key = jax.random.PRNGKey(0)
    kq, kk, kv = jax.random.split(key, 3)

    # Small but tiling-exercising shapes: grid = (2, 3), so the parallel Nq
    # axis, the Nk reduction (accumulator init/finalize) and per-(i,k) weight
    # tiles all get covered.
    nq, nk, d, dv = 512, 384, 64, 128
    queries = jax.random.normal(kq, (nq, d), dtype=jnp.float32)
    keys = jax.random.normal(kk, (nk, d), dtype=jnp.float32)
    values = jax.random.normal(kv, (nk, dv), dtype=jnp.float32)

    out, attn_w = dot_product_attention(queries, keys, values, dropout=0.0)
    out = jax.block_until_ready(out)
    attn_w = jax.block_until_ready(attn_w)

    # Pure-JAX reference check.
    ref_w = (queries @ keys.T) / math.sqrt(d)
    ref_o = ref_w @ values
    assert jnp.allclose(attn_w, ref_w, atol=1e-4, rtol=1e-4), "weights mismatch"
    assert jnp.allclose(out, ref_o, atol=1e-4, rtol=1e-4), "output mismatch"

    print("KERNEL_OK")
</pallas_src>

<mosaic_0001>
module attributes {stable_mosaic.version = 11 : i64} {
  func.func @_attn_kernel(%arg0: i32, %arg1: i32, %arg2: memref<256x64xf32, #tpu.memory_space<vmem>>, %arg3: memref<128x64xf32, #tpu.memory_space<vmem>>, %arg4: memref<128x128xf32, #tpu.memory_space<vmem>>, %arg5: memref<256x128xf32, #tpu.memory_space<vmem>>, %arg6: memref<256x128xf32, #tpu.memory_space<vmem>>, %arg7: memref<256x128xf32, #tpu.memory_space<vmem>>) attributes {dimension_semantics = [#tpu.dimension_semantics<parallel>, #tpu.dimension_semantics<arbitrary>], iteration_bounds = array<i64: 2, 3>, scalar_prefetch = 0 : i64, scratch_operands = 1 : i64, tpu.core_type = #tpu.core_type<tc>, window_params = [{transform_indices = @transform_0, window_bounds = array<i64: 256, 64>}, {transform_indices = @transform_1, window_bounds = array<i64: 128, 64>}, {transform_indices = @transform_2, window_bounds = array<i64: 128, 128>}, {transform_indices = @transform_3, window_bounds = array<i64: 256, 128>}, {transform_indices = @transform_4, window_bounds = array<i64: 256, 128>}]} {
    %c0_i32 = arith.constant 0 : i32
    %0 = arith.cmpi eq, %arg1, %c0_i32 : i32
    %1 = arith.extui %0 : i1 to i32
    %c0_i32_0 = arith.constant 0 : i32
    %2 = arith.cmpi ne, %1, %c0_i32_0 : i32
    scf.if %2 {
      %cst_15 = arith.constant 0.000000e+00 : f32
      %17 = vector.broadcast %cst_15 : f32 to vector<256x128xf32>
      %c0_16 = arith.constant 0 : index
      %c0_17 = arith.constant 0 : index
      %18 = vector.load %arg7[%c0_16, %c0_17] : memref<256x128xf32, #tpu.memory_space<vmem>>, vector<256x128xf32>
      tpu.vector_store %arg7[%c0_16, %c0_17], %17 {strides = array<i32>} : memref<256x128xf32, #tpu.memory_space<vmem>>, vector<256x128xf32>,
    } else {
    }
    %c0 = arith.constant 0 : index
    %c0_1 = arith.constant 0 : index
    %3 = vector.load %arg2[%c0, %c0_1] : memref<256x64xf32, #tpu.memory_space<vmem>>, vector<256x64xf32>
    %cst = arith.constant 1.250000e-01 : f32
    %4 = vector.broadcast %cst : f32 to vector<256x64xf32>
    %5 = arith.mulf %3, %4 : vector<256x64xf32>
    %c0_2 = arith.constant 0 : index
    %c0_3 = arith.constant 0 : index
    %6 = vector.load %arg3[%c0_2, %c0_3] : memref<128x64xf32, #tpu.memory_space<vmem>>, vector<128x64xf32>
    %cst_4 = arith.constant dense<0.000000e+00> : vector<256x128xf32>
    %7 = tpu.matmul %5, %6, %cst_4 {dimension_numbers = #tpu.dot_dimension_numbers<[1], [1], [0], [0], [0, 0, 1, 0], [], []>} : vector<256x64xf32>, vector<128x64xf32>, vector<256x128xf32> -> vector<256x128xf32>
    %c0_5 = arith.constant 0 : index
    %c0_6 = arith.constant 0 : index
    %8 = vector.load %arg6[%c0_5, %c0_6] : memref<256x128xf32, #tpu.memory_space<vmem>>, vector<256x128xf32>
    tpu.vector_store %arg6[%c0_5, %c0_6], %7 {strides = array<i32>} : memref<256x128xf32, #tpu.memory_space<vmem>>, vector<256x128xf32>,
    %c0_7 = arith.constant 0 : index
    %c0_8 = arith.constant 0 : index
    %9 = vector.load %arg7[%c0_7, %c0_8] : memref<256x128xf32, #tpu.memory_space<vmem>>, vector<256x128xf32>
    %c0_9 = arith.constant 0 : index
    %c0_10 = arith.constant 0 : index
    %10 = vector.load %arg4[%c0_9, %c0_10] : memref<128x128xf32, #tpu.memory_space<vmem>>, vector<128x128xf32>
    %cst_11 = arith.constant dense<0.000000e+00> : vector<256x128xf32>
    %11 = tpu.matmul %7, %10, %cst_11 {dimension_numbers = #tpu.dot_dimension_numbers<[1], [0], [0], [1], [0, 0, 1, 1], [], []>} : vector<256x128xf32>, vector<128x128xf32>, vector<256x128xf32> -> vector<256x128xf32>
    %12 = arith.addf %9, %11 : vector<256x128xf32>
    %c0_12 = arith.constant 0 : index
    %c0_13 = arith.constant 0 : index
    %13 = vector.load %arg7[%c0_12, %c0_13] : memref<256x128xf32, #tpu.memory_space<vmem>>, vector<256x128xf32>
    tpu.vector_store %arg7[%c0_12, %c0_13], %12 {strides = array<i32>} : memref<256x128xf32, #tpu.memory_space<vmem>>, vector<256x128xf32>,
    %c2_i32 = arith.constant 2 : i32
    %14 = arith.cmpi eq, %arg1, %c2_i32 : i32
    %15 = arith.extui %14 : i1 to i32
    %c0_i32_14 = arith.constant 0 : i32
    %16 = arith.cmpi ne, %15, %c0_i32_14 : i32
    scf.if %16 {
      %c0_15 = arith.constant 0 : index
      %c0_16 = arith.constant 0 : index
      %17 = vector.load %arg7[%c0_15, %c0_16] : memref<256x128xf32, #tpu.memory_space<vmem>>, vector<256x128xf32>
      %c0_17 = arith.constant 0 : index
      %c0_18 = arith.constant 0 : index
      %18 = vector.load %arg5[%c0_17, %c0_18] : memref<256x128xf32, #tpu.memory_space<vmem>>, vector<256x128xf32>
      tpu.vector_store %arg5[%c0_17, %c0_18], %17 {strides = array<i32>} : memref<256x128xf32, #tpu.memory_space<vmem>>, vector<256x128xf32>,
    } else {
    }
    return
  }
  func.func @transform_0(%arg0: i32, %arg1: i32) -> (i32, i32) {
    %c0_i32 = arith.constant 0 : i32
    %c0_i32_0 = arith.constant 0 : i32
    return %arg0, %c0_i32 : i32, i32
  }
  func.func @transform_1(%arg0: i32, %arg1: i32) -> (i32, i32) {
    %c0_i32 = arith.constant 0 : i32
    %c0_i32_0 = arith.constant 0 : i32
    return %arg1, %c0_i32 : i32, i32
  }
  func.func @transform_2(%arg0: i32, %arg1: i32) -> (i32, i32) {
    %c0_i32 = arith.constant 0 : i32
    %c0_i32_0 = arith.constant 0 : i32
    return %arg1, %c0_i32 : i32, i32
  }
  func.func @transform_3(%arg0: i32, %arg1: i32) -> (i32, i32) {
    %c0_i32 = arith.constant 0 : i32
    %c0_i32_0 = arith.constant 0 : i32
    return %arg0, %c0_i32 : i32, i32
  }
  func.func @transform_4(%arg0: i32, %arg1: i32) -> (i32, i32) {
    %c0_i32 = arith.constant 0 : i32
    return %arg0, %arg1 : i32, i32
  }
}

</mosaic_0001>

<llo_original>
// kernel: tpu_custom_call.1
$region0: #{tpu_custom_call.1}
  #allocation0 [shape = 'u32[]', space=smem, size = 0x4, offset = 0x4, fixed_abs, tag = 'smem constant byte address 0x4 - core index']
  #allocation1 [shape = 'u32[144,128]{1,0:T(1,128)}', space=vmem, size = 0x12000, scoped, tag = 'internal scratch']
  #allocation2 [shape = 'f32[256,128]{1,0:T(8,128)}', space=vmem, size = 0x20000, scoped, tag = 'scratch operand']
  %s0 = inlined_call_operand.vmem [shape: f32[512,64], index: 0, kind: input, shape index: {}]
  %s1 = inlined_call_operand.vmem [shape: f32[384,64], index: 1, kind: input, shape index: {}]
  %s2 = inlined_call_operand.vmem [shape: f32[384,128], index: 2, kind: input, shape index: {}]
  %s3 = inlined_call_operand.hbm [shape: f32[512,128], index: 3, kind: output, shape index: {0}]
  %s4 = inlined_call_operand.hbm [shape: f32[512,384], index: 4, kind: output, shape index: {1}]
  %5 = xla_tuple %s3, %s4
  %s6 = sld [smem:[#allocation0]]
  $region61: #{tpu_custom_call.1} parent=0
    _
  %s8 = ssub.s32 1, %s6
  %s9 = scalar_select 0, %s8, %s6
  $region1: #{tpu_custom_call.1} parent=0
    #allocation3 [shape = 'u8[262144]{0}', space=vmem, size = 0x40000, scoped, tag = 'output window, operand 0']
    #allocation4 [shape = 's32[2]{0}', space=sflag, size = 0x8, scoped, tag = 'scoped memory for tpu_custom_call.1']
    #allocation5 [shape = 'u8[262144]{0}', space=vmem, size = 0x40000, scoped, tag = 'output window, operand 1']
    #allocation6 [shape = 's32[2]{0}', space=sflag, size = 0x8, scoped, tag = 'scoped memory for tpu_custom_call.1']
    %10 = vsyncpa [#allocation4], 0
    %s11 = scalar_lea.sflag [#allocation4], 1
    %12 = vsyncpa %s11, 0
    %13 = vsyncpa [#allocation6], 0
    %s14 = scalar_lea.sflag [#allocation6], 1
    %15 = vsyncpa %s14, 0
    loop: start=0, step=1, limit=8
    $region2: #{tpu_custom_call.1} parent=1 // loop_pre_header
      _
    $region3: #{tpu_custom_call.1} parent=1 // loop_header
      %s17 = sphi 0, %s21
      %p18 = scmp.ge.s32.totalorder %s17, 8
      %s24 = sphi 0, %s36
      %s25 = sphi 0, %s32
      %s26 = sphi 0, %s24
      %s27 = sphi 0, %s25
      %s28 = sphi 0, %s26
      %s29 = sphi 0, %s27
      %s39 = sphi 0, %s41
      %s42 = sphi 0, %s39
      %s43 = sphi 0, %s42
      %s59 = sphi 0, %s43
      %s65 = sphi 0, %s67
      %s68 = sphi 0, %s65
      %s69 = sphi 0, %s68
      %s85 = sphi 0, %s69
      %s91 = sphi 0, %s93
      %s94 = sphi 0, %s91
      %s95 = sphi 0, %s94
      %s111 = sphi 0, %s95
      %s117 = sphi 0, %s119
      %s120 = sphi 0, %s117
      %s121 = sphi 0, %s120
      %s137 = sphi 0, %s121
      %s145 = sphi 0, %s147
      %s148 = sphi 0, %s145
      %s149 = sphi 0, %s148
      %s165 = sphi 0, %s149
    $region4: #{tpu_custom_call.1} parent=1 // loop_header_branch
      %20 = sbr.rel (%p18) target = $region8
    $region5: #{tpu_custom_call.1} parent=1 // loop_body
      %s22 = ssub.s32 %s17, 1
      %s23 = ssub.s32 %s17, 2
      %s30 = sadd.s32 1, %s25
      %p31 = scmp.ge.s32.totalorder %s30, 3
      %s32 = scalar_select %p31, 0, %s30
      %s33 = sadd.s32 1, %s24
      %s34 = scalar_select %p31, %s33, %s24
      %p35 = scmp.ge.s32.totalorder %s34, 2
      %s36 = scalar_select %p35, 0, %s34
      %s37 = ssub.s32 %s24, %s36
      %p38 = scmp.eq.s32.totalorder %s37, 0
      %s40 = sadd.s32 %s39, 1
      %s41 = scalar_select %p38, %s39, %s40
      %p44 = pneg %p38
      %p45 = scmp.eq.s32.totalorder %s17, 5
      %p46 = por %p44, %p45
      %p47 = scmp.ne.s32.totalorder %s39, %s42
      %p48 = scmp.eq.s32.totalorder %s17, 0
      %p49 = por %p47, %p48
      %p50 = scmp.ne.s32.totalorder %s39, %s42
      %p51 = scmp.eq.s32.totalorder %s22, 5
      %p52 = por %p50, %p51
      %p53 = scmp.ne.s32.totalorder %s42, %s43
      %p54 = scmp.eq.s32.totalorder %s22, 0
      %p55 = por %p53, %p54
      %p56 = scmp.ne.s32.totalorder %s42, %s43
      %p57 = scmp.eq.s32.totalorder %s23, 5
      %p58 = por %p56, %p57
      %p60 = scmp.ne.s32.totalorder %s43, %s59
      %p61 = scmp.eq.s32.totalorder %s23, 0
      %p62 = por %p60, %p61
      %s63 = ssub.s32 %s25, %s32
      %p64 = scmp.eq.s32.totalorder %s63, 0
      %s66 = sadd.s32 %s65, 1
      %s67 = scalar_select %p64, %s65, %s66
      %p70 = pneg %p64
      %p71 = scmp.eq.s32.totalorder %s17, 5
      %p72 = por %p70, %p71
      %p73 = scmp.ne.s32.totalorder %s65, %s68
      %p74 = scmp.eq.s32.totalorder %s17, 0
      %p75 = por %p73, %p74
      %p76 = scmp.ne.s32.totalorder %s65, %s68
      %p77 = scmp.eq.s32.totalorder %s22, 5
      %p78 = por %p76, %p77
      %p79 = scmp.ne.s32.totalorder %s68, %s69
      %p80 = scmp.eq.s32.totalorder %s22, 0
      %p81 = por %p79, %p80
      %p82 = scmp.ne.s32.totalorder %s68, %s69
      %p83 = scmp.eq.s32.totalorder %s23, 5
      %p84 = por %p82, %p83
      %p86 = scmp.ne.s32.totalorder %s69, %s85
      %p87 = scmp.eq.s32.totalorder %s23, 0
      %p88 = por %p86, %p87
      %s89 = ssub.s32 %s25, %s32
      %p90 = scmp.eq.s32.totalorder %s89, 0
      %s92 = sadd.s32 %s91, 1
      %s93 = scalar_select %p90, %s91, %s92
      %p96 = pneg %p90
      %p97 = scmp.eq.s32.totalorder %s17, 5
      %p98 = por %p96, %p97
      %p99 = scmp.ne.s32.totalorder %s91, %s94
      %p100 = scmp.eq.s32.totalorder %s17, 0
      %p101 = por %p99, %p100
      %p102 = scmp.ne.s32.totalorder %s91, %s94
      %p103 = scmp.eq.s32.totalorder %s22, 5
      %p104 = por %p102, %p103
      %p105 = scmp.ne.s32.totalorder %s94, %s95
      %p106 = scmp.eq.s32.totalorder %s22, 0
      %p107 = por %p105, %p106
      %p108 = scmp.ne.s32.totalorder %s94, %s95
      %p109 = scmp.eq.s32.totalorder %s23, 5
      %p110 = por %p108, %p109
      %p112 = scmp.ne.s32.totalorder %s95, %s111
      %p113 = scmp.eq.s32.totalorder %s23, 0
      %p114 = por %p112, %p113
      %s115 = ssub.s32 %s24, %s36
      %p116 = scmp.eq.s32.totalorder %s115, 0
      %s118 = sadd.s32 %s117, 1
      %s119 = scalar_select %p116, %s117, %s118
      %p122 = pneg %p116
      %p123 = scmp.eq.s32.totalorder %s17, 5
      %p124 = por %p122, %p123
      %p125 = scmp.ne.s32.totalorder %s117, %s120
      %p126 = scmp.eq.s32.totalorder %s17, 0
      %p127 = por %p125, %p126
      %p128 = scmp.ne.s32.totalorder %s117, %s120
      %p129 = scmp.eq.s32.totalorder %s22, 5
      %p130 = por %p128, %p129
      %p131 = scmp.ne.s32.totalorder %s120, %s121
      %p132 = scmp.eq.s32.totalorder %s22, 0
      %p133 = por %p131, %p132
      %p134 = scmp.ne.s32.totalorder %s120, %s121
      %p135 = scmp.eq.s32.totalorder %s23, 5
      %p136 = por %p134, %p135
      %p138 = scmp.ne.s32.totalorder %s121, %s137
      %p139 = scmp.eq.s32.totalorder %s23, 0
      %p140 = por %p138, %p139
      %s141 = ssub.s32 %s24, %s36
      %s142 = ssub.s32 %s25, %s32
      %s143 = sor.u32 %s141, %s142
      %p144 = scmp.eq.s32.totalorder %s143, 0
      %s146 = sadd.s32 %s145, 1
      %s147 = scalar_select %p144, %s145, %s146
      %p150 = pneg %p144
      %p151 = scmp.eq.s32.totalorder %s17, 5
      %p152 = por %p150, %p151
      %p153 = scmp.ne.s32.totalorder %s145, %s148
      %p154 = scmp.eq.s32.totalorder %s17, 0
      %p155 = por %p153, %p154
      %p156 = scmp.ne.s32.totalorder %s145, %s148
      %p157 = scmp.eq.s32.totalorder %s22, 5
      %p158 = por %p156, %p157
      %p159 = scmp.ne.s32.totalorder %s148, %s149
      %p160 = scmp.eq.s32.totalorder %s22, 0
      %p161 = por %p159, %p160
      %p162 = scmp.ne.s32.totalorder %s148, %s149
      %p163 = scmp.eq.s32.totalorder %s23, 5
      %p164 = por %p162, %p163
      %p166 = scmp.ne.s32.totalorder %s149, %s165
      %p167 = scmp.eq.s32.totalorder %s23, 0
      %p168 = por %p166, %p167
      %p169 = scmp.le.s32.totalorder 1, %s17
      %p170 = scmp.lt.s32.totalorder %s17, 7
      %p171 = pnand %p169, %p170
      %p172 = pneg %p171
      // Predicated region
      $region9: #{tpu_custom_call.1} parent=5 // pred_check
        _
      $region10: #{tpu_custom_call.1} parent=5 // pred_check_branch
        %174 = sbr.rel (%p171) target = $region12
      $region11: #{tpu_custom_call.1} parent=5 // pred_region
        %s175 = ssub.s32 %s17, 1
      $region12: #{tpu_custom_call.1} parent=5 // pred_fallthru
        _
      %p176 = scmp.lt.s32.totalorder %s17, 6
      // Predicated region
      $region13: #{tpu_custom_call.1} parent=5 // pred_check
        %p177 = pneg %p176
      $region14: #{tpu_custom_call.1} parent=5 // pred_check_branch
        %179 = sbr.rel (%p177) target = $region16
      $region15: #{tpu_custom_call.1} parent=5 // pred_region
        // Predicated region
        $region17: #{tpu_custom_call.1} parent=15 // pred_check
          %p180 = pneg %p49
        $region18: #{tpu_custom_call.1} parent=15 // pred_check_branch
          %182 = sbr.rel (%p180) target = $region20
        $region19: #{tpu_custom_call.1} parent=15 // pred_region
          %s183 = smul.u32 32, %s24
          %p184 = scmp.lt.s32.totalorder %s183, 63
          %s185 = scalar_select %p184, %s183, 63
          %s186 = smul.addr %s185, 8
          %s187 = scalar_lea.vmem %s0, %s186
          %s188 = smul.u32 32, %s24
        $region20: #{tpu_custom_call.1} parent=15 // pred_fallthru
          _
        // Predicated region
        $region21: #{tpu_custom_call.1} parent=15 // pred_check
          %p189 = pneg %p75
        $region22: #{tpu_custom_call.1} parent=15 // pred_check_branch
          %191 = sbr.rel (%p189) target = $region24
        $region23: #{tpu_custom_call.1} parent=15 // pred_region
          %s192 = smul.u32 16, %s25
          %p193 = scmp.lt.s32.totalorder %s192, 47
          %s194 = scalar_select %p193, %s192, 47
          %s195 = smul.addr %s194, 8
          %s196 = scalar_lea.vmem %s1, %s195
          %s197 = smul.u32 16, %s25
        $region24: #{tpu_custom_call.1} parent=15 // pred_fallthru
          _
        // Predicated region
        $region25: #{tpu_custom_call.1} parent=15 // pred_check
          %p198 = pneg %p101
        $region26: #{tpu_custom_call.1} parent=15 // pred_check_branch
          %200 = sbr.rel (%p198) target = $region28
        $region27: #{tpu_custom_call.1} parent=15 // pred_region
          %s201 = smul.u32 16, %s25
          %p202 = scmp.lt.s32.totalorder %s201, 47
          %s203 = scalar_select %p202, %s201, 47
          %s204 = smul.addr %s203, 8
          %s205 = scalar_lea.vmem %s2, %s204
          %s206 = smul.u32 16, %s25
        $region28: #{tpu_custom_call.1} parent=15 // pred_fallthru
          _
      $region16: #{tpu_custom_call.1} parent=5 // pred_fallthru
        _
      %p207 = scmp.le.s32.totalorder 1, %s17
      %p208 = scmp.lt.s32.totalorder %s17, 7
      %p209 = pnand %p207, %p208
      %p210 = pneg %p209
      // Predicated region
      $region29: #{tpu_custom_call.1} parent=5 // pred_check
        _
      $region30: #{tpu_custom_call.1} parent=5 // pred_check_branch
        %212 = sbr.rel (%p209) target = $region32
      $region31: #{tpu_custom_call.1} parent=5 // pred_region
        %s213 = ssub.s32 %s17, 1
        %s214 = smul.u32 32, %s26
        %p215 = scmp.lt.s32.totalorder %s214, 63
        %s216 = scalar_select %p215, %s214, 63
        %s217 = smul.addr %s216, 8
        %s218 = scalar_lea.vmem %s0, %s217
        %p219 = pneg %p55
        %p220 = pneg %p52
        %s221 = smul.u32 16, %s27
        %p222 = scmp.lt.s32.totalorder %s221, 47
        %s223 = scalar_select %p222, %s221, 47
        %s224 = smul.addr %s223, 8
        %s225 = scalar_lea.vmem %s1, %s224
        %p226 = pneg %p81
        %p227 = pneg %p78
        %s228 = smul.u32 16, %s27
        %p229 = scmp.lt.s32.totalorder %s228, 47
        %s230 = scalar_select %p229, %s228, 47
        %s231 = smul.addr %s230, 8
        %s232 = scalar_lea.vmem %s2, %s231
        %p233 = pneg %p107
        %p234 = pneg %p104
        %p235 = pneg %p133
        %p236 = pneg %p130
        %s237 = sand.u32 %s120, 1
        %s238 = scalar_lea.sflag [#allocation4], %s237
        %s239 = sand.u32 %s120, 1
        %s240 = smul.addr %s239, 256
        %s241 = scalar_lea.vmem [#allocation3], %s240
        %p242 = pneg %p161
        %p243 = pneg %p158
        %s244 = sand.u32 %s148, 1
        %s245 = scalar_lea.sflag [#allocation6], %s244
        %s246 = sand.u32 %s148, 1
        %s247 = smul.addr %s246, 256
        %s248 = scalar_lea.vmem [#allocation5], %s247
        %s249 = smul.u32 32, %s26
        %p250 = scmp.lt.s32.totalorder %s249, 63
        %s251 = scalar_select %p250, %s249, 63
        %s252 = smul.addr %s251, 8
        %s253 = scalar_lea.vmem %s0, %s252
        %s254 = smul.u32 32, %s26
        %s255 = smul.u32 16, %s27
        %p256 = scmp.lt.s32.totalorder %s255, 47
        %s257 = scalar_select %p256, %s255, 47
        %s258 = smul.addr %s257, 8
        %s259 = scalar_lea.vmem %s1, %s258
        %s260 = smul.u32 16, %s27
        %s261 = smul.u32 16, %s27
        %p262 = scmp.lt.s32.totalorder %s261, 47
        %s263 = scalar_select %p262, %s261, 47
        %s264 = smul.addr %s263, 8
        %s265 = scalar_lea.vmem %s2, %s264
        %s266 = smul.u32 16, %s27
        %s267 = smul.u32 32, %s26
        %s268 = smul.u32 32, %s26
        %p269 = scmp.eq.s32.totalorder %s27, 0
        // Predicated region
        $region33: #{tpu_custom_call.1} parent=31 // pred_check
          %p270 = pneg %p269
        $region34: #{tpu_custom_call.1} parent=31 // pred_check_branch
          %272 = sbr.rel (%p270) target = $region36
        $region35: #{tpu_custom_call.1} parent=31 // pred_region
          %273 = vst [vmem:[#allocation2] sm:$0xff] 0.0
          %274 = vst [vmem:[#allocation2 + $0x8] sm:$0xff] 0.0
          %275 = vst [vmem:[#allocation2 + $0x10] sm:$0xff] 0.0
          %276 = vst [vmem:[#allocation2 + $0x18] sm:$0xff] 0.0
          %277 = vst [vmem:[#allocation2 + $0x20] sm:$0xff] 0.0
          %278 = vst [vmem:[#allocation2 + $0x28] sm:$0xff] 0.0
          %279 = vst [vmem:[#allocation2 + $0x30] sm:$0xff] 0.0
          %280 = vst [vmem:[#allocation2 + $0x38] sm:$0xff] 0.0
          %281 = vst [vmem:[#allocation2 + $0x40] sm:$0xff] 0.0
          %282 = vst [vmem:[#allocation2 + $0x48] sm:$0xff] 0.0
          %283 = vst [vmem:[#allocation2 + $0x50] sm:$0xff] 0.0
          %284 = vst [vmem:[#allocation2 + $0x58] sm:$0xff] 0.0
          %285 = vst [vmem:[#allocation2 + $0x60] sm:$0xff] 0.0
          %286 = vst [vmem:[#allocation2 + $0x68] sm:$0xff] 0.0
          %287 = vst [vmem:[#allocation2 + $0x70] sm:$0xff] 0.0
          %288 = vst [vmem:[#allocation2 + $0x78] sm:$0xff] 0.0
          %289 = vst [vmem:[#allocation2 + $0x80] sm:$0xff] 0.0
          %290 = vst [vmem:[#allocation2 + $0x88] sm:$0xff] 0.0
          %291 = vst [vmem:[#allocation2 + $0x90] sm:$0xff] 0.0
          %292 = vst [vmem:[#allocation2 + $0x98] sm:$0xff] 0.0
          %293 = vst [vmem:[#allocation2 + $0xa0] sm:$0xff] 0.0
          %294 = vst [vmem:[#allocation2 + $0xa8] sm:$0xff] 0.0
          %295 = vst [vmem:[#allocation2 + $0xb0] sm:$0xff] 0.0
          %296 = vst [vmem:[#allocation2 + $0xb8] sm:$0xff] 0.0
          %297 = vst [vmem:[#allocation2 + $0xc0] sm:$0xff] 0.0
          %298 = vst [vmem:[#allocation2 + $0xc8] sm:$0xff] 0.0
          %299 = vst [vmem:[#allocation2 + $0xd0] sm:$0xff] 0.0
          %300 = vst [vmem:[#allocation2 + $0xd8] sm:$0xff] 0.0
          %301 = vst [vmem:[#allocation2 + $0xe0] sm:$0xff] 0.0
          %302 = vst [vmem:[#allocation2 + $0xe8] sm:$0xff] 0.0
          %303 = vst [vmem:[#allocation2 + $0xf0] sm:$0xff] 0.0
          %304 = vst [vmem:[#allocation2 + $0xf8] sm:$0xff] 0.0
        $region36: #{tpu_custom_call.1} parent=31 // pred_fallthru
          _
        %v305 = vld [vmem:[%s253] sm:$0xff]
        %v306 = vld [vmem:[%s253 + $0x8] sm:$0xff]
        %v307 = vld [vmem:[%s253 + $0x10] sm:$0xff]
        %v308 = vld [vmem:[%s253 + $0x18] sm:$0xff]
        %v309 = vld [vmem:[%s253 + $0x20] sm:$0xff]
        %v310 = vld [vmem:[%s253 + $0x28] sm:$0xff]
        %v311 = vld [vmem:[%s253 + $0x30] sm:$0xff]
        %v312 = vld [vmem:[%s253 + $0x38] sm:$0xff]
        %v313 = vld [vmem:[%s253 + $0x40] sm:$0xff]
        %v314 = vld [vmem:[%s253 + $0x48] sm:$0xff]
        %v315 = vld [vmem:[%s253 + $0x50] sm:$0xff]
        %v316 = vld [vmem:[%s253 + $0x58] sm:$0xff]
        %v317 = vld [vmem:[%s253 + $0x60] sm:$0xff]
        %v318 = vld [vmem:[%s253 + $0x68] sm:$0xff]
        %v319 = vld [vmem:[%s253 + $0x70] sm:$0xff]
        %v320 = vld [vmem:[%s253 + $0x78] sm:$0xff]
        %v321 = vld [vmem:[%s253 + $0x80] sm:$0xff]
        %v322 = vld [vmem:[%s253 + $0x88] sm:$0xff]
        %v323 = vld [vmem:[%s253 + $0x90] sm:$0xff]
        %v324 = vld [vmem:[%s253 + $0x98] sm:$0xff]
        %v325 = vld [vmem:[%s253 + $0xa0] sm:$0xff]
        %v326 = vld [vmem:[%s253 + $0xa8] sm:$0xff]
        %v327 = vld [vmem:[%s253 + $0xb0] sm:$0xff]
        %v328 = vld [vmem:[%s253 + $0xb8] sm:$0xff]
        %v329 = vld [vmem:[%s253 + $0xc0] sm:$0xff]
        %v330 = vld [vmem:[%s253 + $0xc8] sm:$0xff]
        %v331 = vld [vmem:[%s253 + $0xd0] sm:$0xff]
        %v332 = vld [vmem:[%s253 + $0xd8] sm:$0xff]
        %v333 = vld [vmem:[%s253 + $0xe0] sm:$0xff]
        %v334 = vld [vmem:[%s253 + $0xe8] sm:$0xff]
        %v335 = vld [vmem:[%s253 + $0xf0] sm:$0xff]
        %v336 = vld [vmem:[%s253 + $0xf8] sm:$0xff]
        %v337 = vmul.f32 %v305, 0.125
        %v338 = vmul.f32 %v306, 0.125
        %v339 = vmul.f32 %v307, 0.125
        %v340 = vmul.f32 %v308, 0.125
        %v341 = vmul.f32 %v309, 0.125
        %v342 = vmul.f32 %v310, 0.125
        %v343 = vmul.f32 %v311, 0.125
        %v344 = vmul.f32 %v312, 0.125
        %v345 = vmul.f32 %v313, 0.125
        %v346 = vmul.f32 %v314, 0.125
        %v347 = vmul.f32 %v315, 0.125
        %v348 = vmul.f32 %v316, 0.125
        %v349 = vmul.f32 %v317, 0.125
        %v350 = vmul.f32 %v318, 0.125
        %v351 = vmul.f32 %v319, 0.125
        %v352 = vmul.f32 %v320, 0.125
        %v353 = vmul.f32 %v321, 0.125
        %v354 = vmul.f32 %v322, 0.125
        %v355 = vmul.f32 %v323, 0.125
        %v356 = vmul.f32 %v324, 0.125
        %v357 = vmul.f32 %v325, 0.125
        %v358 = vmul.f32 %v326, 0.125
        %v359 = vmul.f32 %v327, 0.125
        %v360 = vmul.f32 %v328, 0.125
        %v361 = vmul.f32 %v329, 0.125
        %v362 = vmul.f32 %v330, 0.125
        %v363 = vmul.f32 %v331, 0.125
        %v364 = vmul.f32 %v332, 0.125
        %v365 = vmul.f32 %v333, 0.125
        %v366 = vmul.f32 %v334, 0.125
        %v367 = vmul.f32 %v335, 0.125
        %v368 = vmul.f32 %v336, 0.125
        %v369 = vld [vmem:[%s259] sm:$0xff]
        %v370 = vld [vmem:[%s259 + $0x8] sm:$0xff]
        %v371 = vld [vmem:[%s259 + $0x10] sm:$0xff]
        %v372 = vld [vmem:[%s259 + $0x18] sm:$0xff]
        %v373 = vld [vmem:[%s259 + $0x20] sm:$0xff]
        %v374 = vld [vmem:[%s259 + $0x28] sm:$0xff]
        %v375 = vld [vmem:[%s259 + $0x30] sm:$0xff]
        %v376 = vld [vmem:[%s259 + $0x38] sm:$0xff]
        %v377 = vld [vmem:[%s259 + $0x40] sm:$0xff]
        %v378 = vld [vmem:[%s259 + $0x48] sm:$0xff]
        %v379 = vld [vmem:[%s259 + $0x50] sm:$0xff]
        %v380 = vld [vmem:[%s259 + $0x58] sm:$0xff]
        %v381 = vld [vmem:[%s259 + $0x60] sm:$0xff]
        %v382 = vld [vmem:[%s259 + $0x68] sm:$0xff]
        %v383 = vld [vmem:[%s259 + $0x70] sm:$0xff]
        %v384 = vld [vmem:[%s259 + $0x78] sm:$0xff]
        %vm385 = vcmask 523264
        %v387 = vsel %vm385, %v337, 0
        %v390 = vsel %vm385, %v338, 0
        %v393 = vsel %vm385, %v339, 0
        %v396 = vsel %vm385, %v340, 0
        %v399 = vsel %vm385, %v341, 0
        %v402 = vsel %vm385, %v342, 0
        %v405 = vsel %vm385, %v343, 0
        %v408 = vsel %vm385, %v344, 0
        %v411 = vsel %vm385, %v345, 0
        %v414 = vsel %vm385, %v346, 0
        %v417 = vsel %vm385, %v347, 0
        %v420 = vsel %vm385, %v348, 0
        %v423 = vsel %vm385, %v349, 0
        %v426 = vsel %vm385, %v350, 0
        %v429 = vsel %vm385, %v351, 0
        %v432 = vsel %vm385, %v352, 0
        %v435 = vsel %vm385, %v353, 0
        %v438 = vsel %vm385, %v354, 0
        %v441 = vsel %vm385, %v355, 0
        %v444 = vsel %vm385, %v356, 0
        %v447 = vsel %vm385, %v357, 0
        %v450 = vsel %vm385, %v358, 0
        %v453 = vsel %vm385, %v359, 0
        %v456 = vsel %vm385, %v360, 0
        %v459 = vsel %vm385, %v361, 0
        %v462 = vsel %vm385, %v362, 0
        %v465 = vsel %vm385, %v363, 0
        %v468 = vsel %vm385, %v364, 0
        %v471 = vsel %vm385, %v365, 0
        %v474 = vsel %vm385, %v366, 0
        %v477 = vsel %vm385, %v367, 0
        %v480 = vsel %vm385, %v368, 0
        %v483 = vsel %vm385, %v369, 0
        %v486 = vsel %vm385, %v370, 0
        %v489 = vsel %vm385, %v371, 0
        %v492 = vsel %vm385, %v372, 0
        %v495 = vsel %vm385, %v373, 0
        %v498 = vsel %vm385, %v374, 0
        %v501 = vsel %vm385, %v375, 0
        %v504 = vsel %vm385, %v376, 0
        %v507 = vsel %vm385, %v377, 0
        %v510 = vsel %vm385, %v378, 0
        %v513 = vsel %vm385, %v379, 0
        %v516 = vsel %vm385, %v380, 0
        %v519 = vsel %vm385, %v381, 0
        %v522 = vsel %vm385, %v382, 0
        %v525 = vsel %vm385, %v383, 0
        %v528 = vsel %vm385, %v384, 0
        %530 = vmatprep.subr.mxu0 0.0
        %531 = vmatpush1.xpose.msra.mxu0 %v483
        %532 = vmatprep.subr.mxu0 0.0
        %533 = vmatpush1.xpose.msra.mxu0 %v486
        %534 = vmatprep.subr.mxu0 0.0
        %535 = vmatpush1.xpose.msra.mxu0 %v489
        %536 = vmatprep.subr.mxu0 0.0
        %537 = vmatpush1.xpose.msra.mxu0 %v492
        %538 = vmatprep.subr.mxu0 0.0
        %539 = vmatpush1.xpose.msra.mxu0 %v495
        %540 = vmatprep.subr.mxu0 0.0
        %541 = vmatpush1.xpose.msra.mxu0 %v498
        %542 = vmatprep.subr.mxu0 0.0
        %543 = vmatpush1.xpose.msra.mxu0 %v501
        %544 = vmatprep.subr.mxu0 0.0
        %545 = vmatpush1.xpose.msra.mxu0 %v504
        %546 = vmatprep.subr.mxu0 0.0
        %547 = vmatpush1.xpose.msra.mxu0 %v507
        %548 = vmatprep.subr.mxu0 0.0
        %549 = vmatpush1.xpose.msra.mxu0 %v510
        %550 = vmatprep.subr.mxu0 0.0
        %551 = vmatpush1.xpose.msra.mxu0 %v513
        %552 = vmatprep.subr.mxu0 0.0
        %553 = vmatpush1.xpose.msra.mxu0 %v516
        %554 = vmatprep.subr.mxu0 0.0
        %555 = vmatpush1.xpose.msra.mxu0 %v519
        %556 = vmatprep.subr.mxu0 0.0
        %557 = vmatpush1.xpose.msra.mxu0 %v522
        %558 = vmatprep.subr.mxu0 0.0
        %559 = vmatpush1.xpose.msra.mxu0 %v525
        %560 = vmatprep.subr.mxu0 0.0
        %561 = vmatpush1.xpose.msra.mxu0 %v528
        %562 = vmatprep.subr.mxu0 0.0
        %563 = vmatpush1.xpose.msra.mxu0 0.0
        %564 = vmatprep.subr.mxu0 0.0
        %565 = vmatpush1.xpose.msra.mxu0 0.0
        %566 = vmatprep.subr.mxu0 0.0
        %567 = vmatpush1.xpose.msra.mxu0 0.0
        %568 = vmatprep.subr.mxu0 0.0
        %569 = vmatpush1.xpose.msra.mxu0 0.0
        %570 = vmatprep.subr.mxu0 0.0
        %571 = vmatpush1.xpose.msra.mxu0 0.0
        %572 = vmatprep.subr.mxu0 0.0
        %573 = vmatpush1.xpose.msra.mxu0 0.0
        %574 = vmatprep.subr.mxu0 0.0
        %575 = vmatpush1.xpose.msra.mxu0 0.0
        %576 = vmatprep.subr.mxu0 0.0
        %577 = vmatpush1.xpose.msra.mxu0 0.0
        %578 = vmatprep.subr.mxu0 0.0
        %579 = vmatpush1.xpose.msra.mxu0 0.0
        %580 = vmatprep.subr.mxu0 0.0
        %581 = vmatpush1.xpose.msra.mxu0 0.0
        %582 = vmatprep.subr.mxu0 0.0
        %583 = vmatpush1.xpose.msra.mxu0 0.0
        %584 = vmatprep.subr.mxu0 0.0
        %585 = vmatpush1.xpose.msra.mxu0 0.0
        %586 = vmatprep.subr.mxu0 0.0
        %587 = vmatpush1.xpose.msra.mxu0 0.0
        %588 = vmatprep.subr.mxu0 0.0
        %589 = vmatpush1.xpose.msra.mxu0 0.0
        %590 = vmatprep.subr.mxu0 0.0
        %591 = vmatpush1.xpose.msra.mxu0 0.0
        %592 = vmatprep.subr.mxu0 0.0
        %593 = vmatpush1.xpose.msra.mxu0 0.0
        %594 = vmatprep.mubr.f32.mxu0 0.0
        %595 = vmatmul.mubr.f32.gmra.mrb[0].mxu0 %v387
        %v596 = vpop.f32.mrb[0].mxu0
        %v597 = vadd.f32 0.0, %v596
        %v598 = vpop.f32.mrb[0].mxu0
        %599 = vmatprep.mubr.f32.mxu0 0.0
        %600 = vmatmul.mubr.f32.gmra.mrb[0].mxu0 %v390
        %v601 = vpop.f32.mrb[0].mxu0
        %v602 = vadd.f32 0.0, %v601
        %v603 = vpop.f32.mrb[0].mxu0
        %604 = vmatprep.mubr.f32.mxu0 0.0
        %605 = vmatmul.mubr.f32.gmra.mrb[0].mxu0 %v393
        %v606 = vpop.f32.mrb[0].mxu0
        %v607 = vadd.f32 0.0, %v606
        %v608 = vpop.f32.mrb[0].mxu0
        %609 = vmatprep.mubr.f32.mxu0 0.0
        %610 = vmatmul.mubr.f32.gmra.mrb[0].mxu0 %v396
        %v611 = vpop.f32.mrb[0].mxu0
        %v612 = vadd.f32 0.0, %v611
        %v613 = vpop.f32.mrb[0].mxu0
        %614 = vmatprep.mubr.f32.mxu0 0.0
        %615 = vmatmul.mubr.f32.gmra.mrb[0].mxu0 %v399
        %v616 = vpop.f32.mrb[0].mxu0
        %v617 = vadd.f32 0.0, %v616
        %v618 = vpop.f32.mrb[0].mxu0
        %619 = vmatprep.mubr.f32.mxu0 0.0
        %620 = vmatmul.mubr.f32.gmra.mrb[0].mxu0 %v402
        %v621 = vpop.f32.mrb[0].mxu0
        %v622 = vadd.f32 0.0, %v621
        %v623 = vpop.f32.mrb[0].mxu0
        %624 = vmatprep.mubr.f32.mxu0 0.0
        %625 = vmatmul.mubr.f32.gmra.mrb[0].mxu0 %v405
        %v626 = vpop.f32.mrb[0].mxu0
        %v627 = vadd.f32 0.0, %v626
        %v628 = vpop.f32.mrb[0].mxu0
        %629 = vmatprep.mubr.f32.mxu0 0.0
        %630 = vmatmul.mubr.f32.gmra.mrb[0].mxu0 %v408
        %v631 = vpop.f32.mrb[0].mxu0
        %v632 = vadd.f32 0.0, %v631
        %v633 = vpop.f32.mrb[0].mxu0
        %634 = vmatprep.mubr.f32.mxu0 0.0
        %635 = vmatmul.mubr.f32.gmra.mrb[0].mxu0 %v411
        %v636 = vpop.f32.mrb[0].mxu0
        %v637 = vadd.f32 0.0, %v636
        %v638 = vpop.f32.mrb[0].mxu0
        %639 = vmatprep.mubr.f32.mxu0 0.0
        %640 = vmatmul.mubr.f32.gmra.mrb[0].mxu0 %v414
        %v641 = vpop.f32.mrb[0].mxu0
        %v642 = vadd.f32 0.0, %v641
        %v643 = vpop.f32.mrb[0].mxu0
        %644 = vmatprep.mubr.f32.mxu0 0.0
        %645 = vmatmul.mubr.f32.gmra.mrb[0].mxu0 %v417
        %v646 = vpop.f32.mrb[0].mxu0
        %v647 = vadd.f32 0.0, %v646
        %v648 = vpop.f32.mrb[0].mxu0
        %649 = vmatprep.mubr.f32.mxu0 0.0
        %650 = vmatmul.mubr.f32.gmra.mrb[0].mxu0 %v420
        %v651 = vpop.f32.mrb[0].mxu0
        %v652 = vadd.f32 0.0, %v651
        %v653 = vpop.f32.mrb[0].mxu0
        %654 = vmatprep.mubr.f32.mxu0 0.0
        %655 = vmatmul.mubr.f32.gmra.mrb[0].mxu0 %v423
        %v656 = vpop.f32.mrb[0].mxu0
        %v657 = vadd.f32 0.0, %v656
        %v658 = vpop.f32.mrb[0].mxu0
        %659 = vmatprep.mubr.f32.mxu0 0.0
        %660 = vmatmul.mubr.f32.gmra.mrb[0].mxu0 %v426
        %v661 = vpop.f32.mrb[0].mxu0
        %v662 = vadd.f32 0.0, %v661
        %v663 = vpop.f32.mrb[0].mxu0
        %664 = vmatprep.mubr.f32.mxu0 0.0
        %665 = vmatmul.mubr.f32.gmra.mrb[0].mxu0 %v429
        %v666 = vpop.f32.mrb[0].mxu0
        %v667 = vadd.f32 0.0, %v666
        %v668 = vpop.f32.mrb[0].mxu0
        %669 = vmatprep.mubr.f32.mxu0 0.0
        %670 = vmatmul.mubr.f32.gmra.mrb[0].mxu0 %v432
        %v671 = vpop.f32.mrb[0].mxu0
        %v672 = vadd.f32 0.0, %v671
        %v673 = vpop.f32.mrb[0].mxu0
        %674 = vmatprep.mubr.f32.mxu0 0.0
        %675 = vmatmul.mubr.f32.gmra.mrb[0].mxu0 %v435
        %v676 = vpop.f32.mrb[0].mxu0
        %v677 = vadd.f32 0.0, %v676
        %v678 = vpop.f32.mrb[0].mxu0
        %679 = vmatprep.mubr.f32.mxu0 0.0
        %680 = vmatmul.mubr.f32.gmra.mrb[0].mxu0 %v438
        %v681 = vpop.f32.mrb[0].mxu0
        %v682 = vadd.f32 0.0, %v681
        %v683 = vpop.f32.mrb[0].mxu0
        %684 = vmatprep.mubr.f32.mxu0 0.0
        %685 = vmatmul.mubr.f32.gmra.mrb[0].mxu0 %v441
        %v686 = vpop.f32.mrb[0].mxu0
        %v687 = vadd.f32 0.0, %v686
        %v688 = vpop.f32.mrb[0].mxu0
        %689 = vmatprep.mubr.f32.mxu0 0.0
        %690 = vmatmul.mubr.f32.gmra.mrb[0].mxu0 %v444
        %v691 = vpop.f32.mrb[0].mxu0
        %v692 = vadd.f32 0.0, %v691
        %v693 = vpop.f32.mrb[0].mxu0
        %694 = vmatprep.mubr.f32.mxu0 0.0
        %695 = vmatmul.mubr.f32.gmra.mrb[0].mxu0 %v447
        %v696 = vpop.f32.mrb[0].mxu0
        %v697 = vadd.f32 0.0, %v696
        %v698 = vpop.f32.mrb[0].mxu0
        %699 = vmatprep.mubr.f32.mxu0 0.0
        %700 = vmatmul.mubr.f32.gmra.mrb[0].mxu0 %v450
        %v701 = vpop.f32.mrb[0].mxu0
        %v702 = vadd.f32 0.0, %v701
        %v703 = vpop.f32.mrb[0].mxu0
        %704 = vmatprep.mubr.f32.mxu0 0.0
        %705 = vmatmul.mubr.f32.gmra.mrb[0].mxu0 %v453
        %v706 = vpop.f32.mrb[0].mxu0
        %v707 = vadd.f32 0.0, %v706
        %v708 = vpop.f32.mrb[0].mxu0
        %709 = vmatprep.mubr.f32.mxu0 0.0
        %710 = vmatmul.mubr.f32.gmra.mrb[0].mxu0 %v456
        %v711 = vpop.f32.mrb[0].mxu0
        %v712 = vadd.f32 0.0, %v711
        %v713 = vpop.f32.mrb[0].mxu0
        %714 = vmatprep.mubr.f32.mxu0 0.0
        %715 = vmatmul.mubr.f32.gmra.mrb[0].mxu0 %v459
        %v716 = vpop.f32.mrb[0].mxu0
        %v717 = vadd.f32 0.0, %v716
        %v718 = vpop.f32.mrb[0].mxu0
        %719 = vmatprep.mubr.f32.mxu0 0.0
        %720 = vmatmul.mubr.f32.gmra.mrb[0].mxu0 %v462
        %v721 = vpop.f32.mrb[0].mxu0
        %v722 = vadd.f32 0.0, %v721
        %v723 = vpop.f32.mrb[0].mxu0
        %724 = vmatprep.mubr.f32.mxu0 0.0
        %725 = vmatmul.mubr.f32.gmra.mrb[0].mxu0 %v465
        %v726 = vpop.f32.mrb[0].mxu0
        %v727 = vadd.f32 0.0, %v726
        %v728 = vpop.f32.mrb[0].mxu0
        %729 = vmatprep.mubr.f32.mxu0 0.0
        %730 = vmatmul.mubr.f32.gmra.mrb[0].mxu0 %v468
        %v731 = vpop.f32.mrb[0].mxu0
        %v732 = vadd.f32 0.0, %v731
        %v733 = vpop.f32.mrb[0].mxu0
        %734 = vmatprep.mubr.f32.mxu0 0.0
        %735 = vmatmul.mubr.f32.gmra.mrb[0].mxu0 %v471
        %v736 = vpop.f32.mrb[0].mxu0
        %v737 = vadd.f32 0.0, %v736
        %v738 = vpop.f32.mrb[0].mxu0
        %739 = vmatprep.mubr.f32.mxu0 0.0
        %740 = vmatmul.mubr.f32.gmra.mrb[0].mxu0 %v474
        %v741 = vpop.f32.mrb[0].mxu0
        %v742 = vadd.f32 0.0, %v741
        %v743 = vpop.f32.mrb[0].mxu0
        %744 = vmatprep.mubr.f32.mxu0 0.0
        %745 = vmatmul.mubr.f32.gmra.mrb[0].mxu0 %v477
        %v746 = vpop.f32.mrb[0].mxu0
        %v747 = vadd.f32 0.0, %v746
        %v748 = vpop.f32.mrb[0].mxu0
        %749 = vmatprep.mubr.f32.mxu0 0.0
        %750 = vmatmul.mubr.f32.gmra.mrb[0].mxu0 %v480
        %v751 = vpop.f32.mrb[0].mxu0
        %v752 = vadd.f32 0.0, %v751
        %v753 = vpop.f32.mrb[0].mxu0
        %754 = vdwg.mxu0
        %755 = vst [vmem:[%s248] sm:$0xff] %v597
        %756 = vst [vmem:[%s248 + $0x8] sm:$0xff] %v602
        %757 = vst [vmem:[%s248 + $0x10] sm:$0xff] %v607
        %758 = vst [vmem:[%s248 + $0x18] sm:$0xff] %v612
        %759 = vst [vmem:[%s248 + $0x20] sm:$0xff] %v617
        %760 = vst [vmem:[%s248 + $0x28] sm:$0xff] %v622
        %761 = vst [vmem:[%s248 + $0x30] sm:$0xff] %v627
        %762 = vst [vmem:[%s248 + $0x38] sm:$0xff] %v632
        %763 = vst [vmem:[%s248 + $0x40] sm:$0xff] %v637
        %764 = vst [vmem:[%s248 + $0x48] sm:$0xff] %v642
        %765 = vst [vmem:[%s248 + $0x50] sm:$0xff] %v647
        %766 = vst [vmem:[%s248 + $0x58] sm:$0xff] %v652
        %767 = vst [vmem:[%s248 + $0x60] sm:$0xff] %v657
        %768 = vst [vmem:[%s248 + $0x68] sm:$0xff] %v662
        %769 = vst [vmem:[%s248 + $0x70] sm:$0xff] %v667
        %770 = vst [vmem:[%s248 + $0x78] sm:$0xff] %v672
        %771 = vst [vmem:[%s248 + $0x80] sm:$0xff] %v677
        %772 = vst [vmem:[%s248 + $0x88] sm:$0xff] %v682
        %773 = vst [vmem:[%s248 + $0x90] sm:$0xff] %v687
        %774 = vst [vmem:[%s248 + $0x98] sm:$0xff] %v692
        %775 = vst [vmem:[%s248 + $0xa0] sm:$0xff] %v697
        %776 = vst [vmem:[%s248 + $0xa8] sm:$0xff] %v702
        %777 = vst [vmem:[%s248 + $0xb0] sm:$0xff] %v707
        %778 = vst [vmem:[%s248 + $0xb8] sm:$0xff] %v712
        %779 = vst [vmem:[%s248 + $0xc0] sm:$0xff] %v717
        %780 = vst [vmem:[%s248 + $0xc8] sm:$0xff] %v722
        %781 = vst [vmem:[%s248 + $0xd0] sm:$0xff] %v727
        %782 = vst [vmem:[%s248 + $0xd8] sm:$0xff] %v732
        %783 = vst [vmem:[%s248 + $0xe0] sm:$0xff] %v737
        %784 = vst [vmem:[%s248 + $0xe8] sm:$0xff] %v742
        %785 = vst [vmem:[%s248 + $0xf0] sm:$0xff] %v747
        %786 = vst [vmem:[%s248 + $0xf8] sm:$0xff] %v752
        %v787 = vld [vmem:[#allocation2] sm:$0xff]
        %v788 = vld [vmem:[#allocation2 + $0x8] sm:$0xff]
        %v789 = vld [vmem:[#allocation2 + $0x10] sm:$0xff]
        %v790 = vld [vmem:[#allocation2 + $0x18] sm:$0xff]
        %v791 = vld [vmem:[#allocation2 + $0x20] sm:$0xff]
        %v792 = vld [vmem:[#allocation2 + $0x28] sm:$0xff]
        %v793 = vld [vmem:[#allocation2 + $0x30] sm:$0xff]
        %v794 = vld [vmem:[#allocation2 + $0x38] sm:$0xff]
        %v795 = vld [vmem:[#allocation2 + $0x40] sm:$0xff]
        %v796 = vld [vmem:[#allocation2 + $0x48] sm:$0xff]
        %v797 = vld [vmem:[#allocation2 + $0x50] sm:$0xff]
        %v798 = vld [vmem:[#allocation2 + $0x58] sm:$0xff]
        %v799 = vld [vmem:[#allocation2 + $0x60] sm:$0xff]
        %v800 = vld [vmem:[#allocation2 + $0x68] sm:$0xff]
        %v801 = vld [vmem:[#allocation2 + $0x70] sm:$0xff]
        %v802 = vld [vmem:[#allocation2 + $0x78] sm:$0xff]
        %v803 = vld [vmem:[#allocation2 + $0x80] sm:$0xff]
        %v804 = vld [vmem:[#allocation2 + $0x88] sm:$0xff]
        %v805 = vld [vmem:[#allocation2 + $0x90] sm:$0xff]
        %v806 = vld [vmem:[#allocation2 + $0x98] sm:$0xff]
        %v807 = vld [vmem:[#allocation2 + $0xa0] sm:$0xff]
        %v808 = vld [vmem:[#allocation2 + $0xa8] sm:$0xff]
        %v809 = vld [vmem:[#allocation2 + $0xb0] sm:$0xff]
        %v810 = vld [vmem:[#allocation2 + $0xb8] sm:$0xff]
        %v811 = vld [vmem:[#allocation2 + $0xc0] sm:$0xff]
        %v812 = vld [vmem:[#allocation2 + $0xc8] sm:$0xff]
        %v813 = vld [vmem:[#allocation2 + $0xd0] sm:$0xff]
        %v814 = vld [vmem:[#allocation2 + $0xd8] sm:$0xff]
        %v815 = vld [vmem:[#allocation2 + $0xe0] sm:$0xff]
        %v816 = vld [vmem:[#allocation2 + $0xe8] sm:$0xff]
        %v817 = vld [vmem:[#allocation2 + $0xf0] sm:$0xff]
        %v818 = vld [vmem:[#allocation2 + $0xf8] sm:$0xff]
        %v819 = vld [vmem:[%s265] sm:$0xff]
        %v820 = vld [vmem:[%s265 + $0x8] sm:$0xff]
        %v821 = vld [vmem:[%s265 + $0x10] sm:$0xff]
        %v822 = vld [vmem:[%s265 + $0x18] sm:$0xff]
        %v823 = vld [vmem:[%s265 + $0x20] sm:$0xff]
        %v824 = vld [vmem:[%s265 + $0x28] sm:$0xff]
        %v825 = vld [vmem:[%s265 + $0x30] sm:$0xff]
        %v826 = vld [vmem:[%s265 + $0x38] sm:$0xff]
        %v827 = vld [vmem:[%s265 + $0x40] sm:$0xff]
        %v828 = vld [vmem:[%s265 + $0x48] sm:$0xff]
        %v829 = vld [vmem:[%s265 + $0x50] sm:$0xff]
        %v830 = vld [vmem:[%s265 + $0x58] sm:$0xff]
        %v831 = vld [vmem:[%s265 + $0x60] sm:$0xff]
        %v832 = vld [vmem:[%s265 + $0x68] sm:$0xff]
        %v833 = vld [vmem:[%s265 + $0x70] sm:$0xff]
        %v834 = vld [vmem:[%s265 + $0x78] sm:$0xff]
        %835 = vmatprep.subr.mxu0 0.0
        %836 = vmatpush1.msra.mxu0 %v819
        %837 = vmatprep.subr.mxu0 0.0
        %838 = vmatpush1.msra.mxu0 %v820
        %839 = vmatprep.subr.mxu0 0.0
        %840 = vmatpush1.msra.mxu0 %v821
        %841 = vmatprep.subr.mxu0 0.0
        %842 = vmatpush1.msra.mxu0 %v822
        %843 = vmatprep.subr.mxu0 0.0
        %844 = vmatpush1.msra.mxu0 %v823
        %845 = vmatprep.subr.mxu0 0.0
        %846 = vmatpush1.msra.mxu0 %v824
        %847 = vmatprep.subr.mxu0 0.0
        %848 = vmatpush1.msra.mxu0 %v825
        %849 = vmatprep.subr.mxu0 0.0
        %850 = vmatpush1.msra.mxu0 %v826
        %851 = vmatprep.subr.mxu0 0.0
        %852 = vmatpush1.msra.mxu0 %v827
        %853 = vmatprep.subr.mxu0 0.0
        %854 = vmatpush1.msra.mxu0 %v828
        %855 = vmatprep.subr.mxu0 0.0
        %856 = vmatpush1.msra.mxu0 %v829
        %857 = vmatprep.subr.mxu0 0.0
        %858 = vmatpush1.msra.mxu0 %v830
        %859 = vmatprep.subr.mxu0 0.0
        %860 = vmatpush1.msra.mxu0 %v831
        %861 = vmatprep.subr.mxu0 0.0
        %862 = vmatpush1.msra.mxu0 %v832
        %863 = vmatprep.subr.mxu0 0.0
        %864 = vmatpush1.msra.mxu0 %v833
        %865 = vmatprep.subr.mxu0 0.0
        %866 = vmatpush1.msra.mxu0 %v834
        %867 = vmatprep.subr.mxu0 0.0
        %868 = vmatpush1.msra.mxu0 0.0
        %869 = vmatprep.subr.mxu0 0.0
        %870 = vmatpush1.msra.mxu0 0.0
        %871 = vmatprep.subr.mxu0 0.0
        %872 = vmatpush1.msra.mxu0 0.0
        %873 = vmatprep.subr.mxu0 0.0
        %874 = vmatpush1.msra.mxu0 0.0
        %875 = vmatprep.subr.mxu0 0.0
        %876 = vmatpush1.msra.mxu0 0.0
        %877 = vmatprep.subr.mxu0 0.0
        %878 = vmatpush1.msra.mxu0 0.0
        %879 = vmatprep.subr.mxu0 0.0
        %880 = vmatpush1.msra.mxu0 0.0
        %881 = vmatprep.subr.mxu0 0.0
        %882 = vmatpush1.msra.mxu0 0.0
        %883 = vmatprep.subr.mxu0 0.0
        %884 = vmatpush1.msra.mxu0 0.0
        %885 = vmatprep.subr.mxu0 0.0
        %886 = vmatpush1.msra.mxu0 0.0
        %887 = vmatprep.subr.mxu0 0.0
        %888 = vmatpush1.msra.mxu0 0.0
        %889 = vmatprep.subr.mxu0 0.0
        %890 = vmatpush1.msra.mxu0 0.0
        %891 = vmatprep.subr.mxu0 0.0
        %892 = vmatpush1.msra.mxu0 0.0
        %893 = vmatprep.subr.mxu0 0.0
        %894 = vmatpush1.msra.mxu0 0.0
        %895 = vmatprep.subr.mxu0 0.0
        %896 = vmatpush1.msra.mxu0 0.0
        %897 = vmatprep.subr.mxu0 0.0
        %898 = vmatpush1.msra.mxu0 0.0
        %899 = vmatprep.mubr.f32.mxu0 0.0
        %900 = vmatmul.mubr.f32.gmra.mrb[0].mxu0 %v597
        %v901 = vpop.f32.mrb[0].mxu0
        %v902 = vadd.f32 0.0, %v901
        %v903 = vpop.f32.mrb[0].mxu0
        %904 = vmatprep.mubr.f32.mxu0 0.0
        %905 = vmatmul.mubr.f32.gmra.mrb[0].mxu0 %v602
        %v906 = vpop.f32.mrb[0].mxu0
        %v907 = vadd.f32 0.0, %v906
        %v908 = vpop.f32.mrb[0].mxu0
        %909 = vmatprep.mubr.f32.mxu0 0.0
        %910 = vmatmul.mubr.f32.gmra.mrb[0].mxu0 %v607
        %v911 = vpop.f32.mrb[0].mxu0
        %v912 = vadd.f32 0.0, %v911
        %v913 = vpop.f32.mrb[0].mxu0
        %914 = vmatprep.mubr.f32.mxu0 0.0
        %915 = vmatmul.mubr.f32.gmra.mrb[0].mxu0 %v612
        %v916 = vpop.f32.mrb[0].mxu0
        %v917 = vadd.f32 0.0, %v916
        %v918 = vpop.f32.mrb[0].mxu0
        %919 = vmatprep.mubr.f32.mxu0 0.0
        %920 = vmatmul.mubr.f32.gmra.mrb[0].mxu0 %v617
        %v921 = vpop.f32.mrb[0].mxu0
        %v922 = vadd.f32 0.0, %v921
        %v923 = vpop.f32.mrb[0].mxu0
        %924 = vmatprep.mubr.f32.mxu0 0.0
        %925 = vmatmul.mubr.f32.gmra.mrb[0].mxu0 %v622
        %v926 = vpop.f32.mrb[0].mxu0
        %v927 = vadd.f32 0.0, %v926
        %v928 = vpop.f32.mrb[0].mxu0
        %929 = vmatprep.mubr.f32.mxu0 0.0
        %930 = vmatmul.mubr.f32.gmra.mrb[0].mxu0 %v627
        %v931 = vpop.f32.mrb[0].mxu0
        %v932 = vadd.f32 0.0, %v931
        %v933 = vpop.f32.mrb[0].mxu0
        %934 = vmatprep.mubr.f32.mxu0 0.0
        %935 = vmatmul.mubr.f32.gmra.mrb[0].mxu0 %v632
        %v936 = vpop.f32.mrb[0].mxu0
        %v937 = vadd.f32 0.0, %v936
        %v938 = vpop.f32.mrb[0].mxu0
        %939 = vmatprep.mubr.f32.mxu0 0.0
        %940 = vmatmul.mubr.f32.gmra.mrb[0].mxu0 %v637
        %v941 = vpop.f32.mrb[0].mxu0
        %v942 = vadd.f32 0.0, %v941
        %v943 = vpop.f32.mrb[0].mxu0
        %944 = vmatprep.mubr.f32.mxu0 0.0
        %945 = vmatmul.mubr.f32.gmra.mrb[0].mxu0 %v642
        %v946 = vpop.f32.mrb[0].mxu0
        %v947 = vadd.f32 0.0, %v946
        %v948 = vpop.f32.mrb[0].mxu0
        %949 = vmatprep.mubr.f32.mxu0 0.0
        %950 = vmatmul.mubr.f32.gmra.mrb[0].mxu0 %v647
        %v951 = vpop.f32.mrb[0].mxu0
        %v952 = vadd.f32 0.0, %v951
        %v953 = vpop.f32.mrb[0].mxu0
        %954 = vmatprep.mubr.f32.mxu0 0.0
        %955 = vmatmul.mubr.f32.gmra.mrb[0].mxu0 %v652
        %v956 = vpop.f32.mrb[0].mxu0
        %v957 = vadd.f32 0.0, %v956
        %v958 = vpop.f32.mrb[0].mxu0
        %959 = vmatprep.mubr.f32.mxu0 0.0
        %960 = vmatmul.mubr.f32.gmra.mrb[0].mxu0 %v657
        %v961 = vpop.f32.mrb[0].mxu0
        %v962 = vadd.f32 0.0, %v961
        %v963 = vpop.f32.mrb[0].mxu0
        %964 = vmatprep.mubr.f32.mxu0 0.0
        %965 = vmatmul.mubr.f32.gmra.mrb[0].mxu0 %v662
        %v966 = vpop.f32.mrb[0].mxu0
        %v967 = vadd.f32 0.0, %v966
        %v968 = vpop.f32.mrb[0].mxu0
        %969 = vmatprep.mubr.f32.mxu0 0.0
        %970 = vmatmul.mubr.f32.gmra.mrb[0].mxu0 %v667
        %v971 = vpop.f32.mrb[0].mxu0
        %v972 = vadd.f32 0.0, %v971
        %v973 = vpop.f32.mrb[0].mxu0
        %974 = vmatprep.mubr.f32.mxu0 0.0
        %975 = vmatmul.mubr.f32.gmra.mrb[0].mxu0 %v672
        %v976 = vpop.f32.mrb[0].mxu0
        %v977 = vadd.f32 0.0, %v976
        %v978 = vpop.f32.mrb[0].mxu0
        %979 = vmatprep.mubr.f32.mxu0 0.0
        %980 = vmatmul.mubr.f32.gmra.mrb[0].mxu0 %v677
        %v981 = vpop.f32.mrb[0].mxu0
        %v982 = vadd.f32 0.0, %v981
        %v983 = vpop.f32.mrb[0].mxu0
        %984 = vmatprep.mubr.f32.mxu0 0.0
        %985 = vmatmul.mubr.f32.gmra.mrb[0].mxu0 %v682
        %v986 = vpop.f32.mrb[0].mxu0
        %v987 = vadd.f32 0.0, %v986
        %v988 = vpop.f32.mrb[0].mxu0
        %989 = vmatprep.mubr.f32.mxu0 0.0
        %990 = vmatmul.mubr.f32.gmra.mrb[0].mxu0 %v687
        %v991 = vpop.f32.mrb[0].mxu0
        %v992 = vadd.f32 0.0, %v991
        %v993 = vpop.f32.mrb[0].mxu0
        %994 = vmatprep.mubr.f32.mxu0 0.0
        %995 = vmatmul.mubr.f32.gmra.mrb[0].mxu0 %v692
        %v996 = vpop.f32.mrb[0].mxu0
        %v997 = vadd.f32 0.0, %v996
        %v998 = vpop.f32.mrb[0].mxu0
        %999 = vmatprep.mubr.f32.mxu0 0.0
        %1000 = vmatmul.mubr.f32.gmra.mrb[0].mxu0 %v697
        %v1001 = vpop.f32.mrb[0].mxu0
        %v1002 = vadd.f32 0.0, %v1001
        %v1003 = vpop.f32.mrb[0].mxu0
        %1004 = vmatprep.mubr.f32.mxu0 0.0
        %1005 = vmatmul.mubr.f32.gmra.mrb[0].mxu0 %v702
        %v1006 = vpop.f32.mrb[0].mxu0
        %v1007 = vadd.f32 0.0, %v1006
        %v1008 = vpop.f32.mrb[0].mxu0
        %1009 = vmatprep.mubr.f32.mxu0 0.0
        %1010 = vmatmul.mubr.f32.gmra.mrb[0].mxu0 %v707
        %v1011 = vpop.f32.mrb[0].mxu0
        %v1012 = vadd.f32 0.0, %v1011
        %v1013 = vpop.f32.mrb[0].mxu0
        %1014 = vmatprep.mubr.f32.mxu0 0.0
        %1015 = vmatmul.mubr.f32.gmra.mrb[0].mxu0 %v712
        %v1016 = vpop.f32.mrb[0].mxu0
        %v1017 = vadd.f32 0.0, %v1016
        %v1018 = vpop.f32.mrb[0].mxu0
        %1019 = vmatprep.mubr.f32.mxu0 0.0
        %1020 = vmatmul.mubr.f32.gmra.mrb[0].mxu0 %v717
        %v1021 = vpop.f32.mrb[0].mxu0
        %v1022 = vadd.f32 0.0, %v1021
        %v1023 = vpop.f32.mrb[0].mxu0
        %1024 = vmatprep.mubr.f32.mxu0 0.0
        %1025 = vmatmul.mubr.f32.gmra.mrb[0].mxu0 %v722
        %v1026 = vpop.f32.mrb[0].mxu0
        %v1027 = vadd.f32 0.0, %v1026
        %v1028 = vpop.f32.mrb[0].mxu0
        %1029 = vmatprep.mubr.f32.mxu0 0.0
        %1030 = vmatmul.mubr.f32.gmra.mrb[0].mxu0 %v727
        %v1031 = vpop.f32.mrb[0].mxu0
        %v1032 = vadd.f32 0.0, %v1031
        %v1033 = vpop.f32.mrb[0].mxu0
        %1034 = vmatprep.mubr.f32.mxu0 0.0
        %1035 = vmatmul.mubr.f32.gmra.mrb[0].mxu0 %v732
        %v1036 = vpop.f32.mrb[0].mxu0
        %v1037 = vadd.f32 0.0, %v1036
        %v1038 = vpop.f32.mrb[0].mxu0
        %1039 = vmatprep.mubr.f32.mxu0 0.0
        %1040 = vmatmul.mubr.f32.gmra.mrb[0].mxu0 %v737
        %v1041 = vpop.f32.mrb[0].mxu0
        %v1042 = vadd.f32 0.0, %v1041
        %v1043 = vpop.f32.mrb[0].mxu0
        %1044 = vmatprep.mubr.f32.mxu0 0.0
        %1045 = vmatmul.mubr.f32.gmra.mrb[0].mxu0 %v742
        %v1046 = vpop.f32.mrb[0].mxu0
        %v1047 = vadd.f32 0.0, %v1046
        %v1048 = vpop.f32.mrb[0].mxu0
        %1049 = vmatprep.mubr.f32.mxu0 0.0
        %1050 = vmatmul.mubr.f32.gmra.mrb[0].mxu0 %v747
        %v1051 = vpop.f32.mrb[0].mxu0
        %v1052 = vadd.f32 0.0, %v1051
        %v1053 = vpop.f32.mrb[0].mxu0
        %1054 = vmatprep.mubr.f32.mxu0 0.0
        %1055 = vmatmul.mubr.f32.gmra.mrb[0].mxu0 %v752
        %v1056 = vpop.f32.mrb[0].mxu0
        %v1057 = vadd.f32 0.0, %v1056
        %v1058 = vpop.f32.mrb[0].mxu0
        %1059 = vdwg.mxu0
        %v1060 = vadd.f32 %v787, %v902
        %v1061 = vadd.f32 %v788, %v907
        %v1062 = vadd.f32 %v789, %v912
        %v1063 = vadd.f32 %v790, %v917
        %v1064 = vadd.f32 %v791, %v922
        %v1065 = vadd.f32 %v792, %v927
        %v1066 = vadd.f32 %v793, %v932
        %v1067 = vadd.f32 %v794, %v937
        %v1068 = vadd.f32 %v795, %v942
        %v1069 = vadd.f32 %v796, %v947
        %v1070 = vadd.f32 %v797, %v952
        %v1071 = vadd.f32 %v798, %v957
        %v1072 = vadd.f32 %v799, %v962
        %v1073 = vadd.f32 %v800, %v967
        %v1074 = vadd.f32 %v801, %v972
        %v1075 = vadd.f32 %v802, %v977
        %v1076 = vadd.f32 %v803, %v982
        %v1077 = vadd.f32 %v804, %v987
        %v1078 = vadd.f32 %v805, %v992
        %v1079 = vadd.f32 %v806, %v997
        %v1080 = vadd.f32 %v807, %v1002
        %v1081 = vadd.f32 %v808, %v1007
        %v1082 = vadd.f32 %v809, %v1012
        %v1083 = vadd.f32 %v810, %v1017
        %v1084 = vadd.f32 %v811, %v1022
        %v1085 = vadd.f32 %v812, %v1027
        %v1086 = vadd.f32 %v813, %v1032
        %v1087 = vadd.f32 %v814, %v1037
        %v1088 = vadd.f32 %v815, %v1042
        %v1089 = vadd.f32 %v816, %v1047
        %v1090 = vadd.f32 %v817, %v1052
        %v1091 = vadd.f32 %v818, %v1057
        %1092 = vst [vmem:[#allocation2] sm:$0xff] %v1060
        %1093 = vst [vmem:[#allocation2 + $0x8] sm:$0xff] %v1061
        %1094 = vst [vmem:[#allocation2 + $0x10] sm:$0xff] %v1062
        %1095 = vst [vmem:[#allocation2 + $0x18] sm:$0xff] %v1063
        %1096 = vst [vmem:[#allocation2 + $0x20] sm:$0xff] %v1064
        %1097 = vst [vmem:[#allocation2 + $0x28] sm:$0xff] %v1065
        %1098 = vst [vmem:[#allocation2 + $0x30] sm:$0xff] %v1066
        %1099 = vst [vmem:[#allocation2 + $0x38] sm:$0xff] %v1067
        %1100 = vst [vmem:[#allocation2 + $0x40] sm:$0xff] %v1068
        %1101 = vst [vmem:[#allocation2 + $0x48] sm:$0xff] %v1069
        %1102 = vst [vmem:[#allocation2 + $0x50] sm:$0xff] %v1070
        %1103 = vst [vmem:[#allocation2 + $0x58] sm:$0xff] %v1071
        %1104 = vst [vmem:[#allocation2 + $0x60] sm:$0xff] %v1072
        %1105 = vst [vmem:[#allocation2 + $0x68] sm:$0xff] %v1073
        %1106 = vst [vmem:[#allocation2 + $0x70] sm:$0xff] %v1074
        %1107 = vst [vmem:[#allocation2 + $0x78] sm:$0xff] %v1075
        %1108 = vst [vmem:[#allocation2 + $0x80] sm:$0xff] %v1076
        %1109 = vst [vmem:[#allocation2 + $0x88] sm:$0xff] %v1077
        %1110 = vst [vmem:[#allocation2 + $0x90] sm:$0xff] %v1078
        %1111 = vst [vmem:[#allocation2 + $0x98] sm:$0xff] %v1079
        %1112 = vst [vmem:[#allocation2 + $0xa0] sm:$0xff] %v1080
        %1113 = vst [vmem:[#allocation2 + $0xa8] sm:$0xff] %v1081
        %1114 = vst [vmem:[#allocation2 + $0xb0] sm:$0xff] %v1082
        %1115 = vst [vmem:[#allocation2 + $0xb8] sm:$0xff] %v1083
        %1116 = vst [vmem:[#allocation2 + $0xc0] sm:$0xff] %v1084
        %1117 = vst [vmem:[#allocation2 + $0xc8] sm:$0xff] %v1085
        %1118 = vst [vmem:[#allocation2 + $0xd0] sm:$0xff] %v1086
        %1119 = vst [vmem:[#allocation2 + $0xd8] sm:$0xff] %v1087
        %1120 = vst [vmem:[#allocation2 + $0xe0] sm:$0xff] %v1088
        %1121 = vst [vmem:[#allocation2 + $0xe8] sm:$0xff] %v1089
        %1122 = vst [vmem:[#allocation2 + $0xf0] sm:$0xff] %v1090
        %1123 = vst [vmem:[#allocation2 + $0xf8] sm:$0xff] %v1091
        %p1124 = scmp.eq.s32.totalorder %s27, 2
        // Predicated region
        $region37: #{tpu_custom_call.1} parent=31 // pred_check
          %p1125 = pneg %p1124
        $region38: #{tpu_custom_call.1} parent=31 // pred_check_branch
          %1127 = sbr.rel (%p1125) target = $region40
        $region39: #{tpu_custom_call.1} parent=31 // pred_region
          %v1128 = vld [vmem:[#allocation2] sm:$0xff]
          %v1129 = vld [vmem:[#allocation2 + $0x8] sm:$0xff]
          %v1130 = vld [vmem:[#allocation2 + $0x10] sm:$0xff]
          %v1131 = vld [vmem:[#allocation2 + $0x18] sm:$0xff]
          %v1132 = vld [vmem:[#allocation2 + $0x20] sm:$0xff]
          %v1133 = vld [vmem:[#allocation2 + $0x28] sm:$0xff]
          %v1134 = vld [vmem:[#allocation2 + $0x30] sm:$0xff]
          %v1135 = vld [vmem:[#allocation2 + $0x38] sm:$0xff]
          %v1136 = vld [vmem:[#allocation2 + $0x40] sm:$0xff]
          %v1137 = vld [vmem:[#allocation2 + $0x48] sm:$0xff]
          %v1138 = vld [vmem:[#allocation2 + $0x50] sm:$0xff]
          %v1139 = vld [vmem:[#allocation2 + $0x58] sm:$0xff]
          %v1140 = vld [vmem:[#allocation2 + $0x60] sm:$0xff]
          %v1141 = vld [vmem:[#allocation2 + $0x68] sm:$0xff]
          %v1142 = vld [vmem:[#allocation2 + $0x70] sm:$0xff]
          %v1143 = vld [vmem:[#allocation2 + $0x78] sm:$0xff]
          %v1144 = vld [vmem:[#allocation2 + $0x80] sm:$0xff]
          %v1145 = vld [vmem:[#allocation2 + $0x88] sm:$0xff]
          %v1146 = vld [vmem:[#allocation2 + $0x90] sm:$0xff]
          %v1147 = vld [vmem:[#allocation2 + $0x98] sm:$0xff]
          %v1148 = vld [vmem:[#allocation2 + $0xa0] sm:$0xff]
          %v1149 = vld [vmem:[#allocation2 + $0xa8] sm:$0xff]
          %v1150 = vld [vmem:[#allocation2 + $0xb0] sm:$0xff]
          %v1151 = vld [vmem:[#allocation2 + $0xb8] sm:$0xff]
          %v1152 = vld [vmem:[#allocation2 + $0xc0] sm:$0xff]
          %v1153 = vld [vmem:[#allocation2 + $0xc8] sm:$0xff]
          %v1154 = vld [vmem:[#allocation2 + $0xd0] sm:$0xff]
          %v1155 = vld [vmem:[#allocation2 + $0xd8] sm:$0xff]
          %v1156 = vld [vmem:[#allocation2 + $0xe0] sm:$0xff]
          %v1157 = vld [vmem:[#allocation2 + $0xe8] sm:$0xff]
          %v1158 = vld [vmem:[#allocation2 + $0xf0] sm:$0xff]
          %v1159 = vld [vmem:[#allocation2 + $0xf8] sm:$0xff]
          %1160 = vst [vmem:[%s241] sm:$0xff] %v1128
          %1161 = vst [vmem:[%s241 + $0x8] sm:$0xff] %v1129
          %1162 = vst [vmem:[%s241 + $0x10] sm:$0xff] %v1130
          %1163 = vst [vmem:[%s241 + $0x18] sm:$0xff] %v1131
          %1164 = vst [vmem:[%s241 + $0x20] sm:$0xff] %v1132
          %1165 = vst [vmem:[%s241 + $0x28] sm:$0xff] %v1133
          %1166 = vst [vmem:[%s241 + $0x30] sm:$0xff] %v1134
          %1167 = vst [vmem:[%s241 + $0x38] sm:$0xff] %v1135
          %1168 = vst [vmem:[%s241 + $0x40] sm:$0xff] %v1136
          %1169 = vst [vmem:[%s241 + $0x48] sm:$0xff] %v1137
          %1170 = vst [vmem:[%s241 + $0x50] sm:$0xff] %v1138
          %1171 = vst [vmem:[%s241 + $0x58] sm:$0xff] %v1139
          %1172 = vst [vmem:[%s241 + $0x60] sm:$0xff] %v1140
          %1173 = vst [vmem:[%s241 + $0x68] sm:$0xff] %v1141
          %1174 = vst [vmem:[%s241 + $0x70] sm:$0xff] %v1142
          %1175 = vst [vmem:[%s241 + $0x78] sm:$0xff] %v1143
          %1176 = vst [vmem:[%s241 + $0x80] sm:$0xff] %v1144
          %1177 = vst [vmem:[%s241 + $0x88] sm:$0xff] %v1145
          %1178 = vst [vmem:[%s241 + $0x90] sm:$0xff] %v1146
          %1179 = vst [vmem:[%s241 + $0x98] sm:$0xff] %v1147
          %1180 = vst [vmem:[%s241 + $0xa0] sm:$0xff] %v1148
          %1181 = vst [vmem:[%s241 + $0xa8] sm:$0xff] %v1149
          %1182 = vst [vmem:[%s241 + $0xb0] sm:$0xff] %v1150
          %1183 = vst [vmem:[%s241 + $0xb8] sm:$0xff] %v1151
          %1184 = vst [vmem:[%s241 + $0xc0] sm:$0xff] %v1152
          %1185 = vst [vmem:[%s241 + $0xc8] sm:$0xff] %v1153
          %1186 = vst [vmem:[%s241 + $0xd0] sm:$0xff] %v1154
          %1187 = vst [vmem:[%s241 + $0xd8] sm:$0xff] %v1155
          %1188 = vst [vmem:[%s241 + $0xe0] sm:$0xff] %v1156
          %1189 = vst [vmem:[%s241 + $0xe8] sm:$0xff] %v1157
          %1190 = vst [vmem:[%s241 + $0xf0] sm:$0xff] %v1158
          %1191 = vst [vmem:[%s241 + $0xf8] sm:$0xff] %v1159
        $region40: #{tpu_custom_call.1} parent=31 // pred_fallthru
          _
        %s1192 = sand.u32 %s120, 1
        %s1193 = scalar_lea.sflag [#allocation4], %s1192
        %s1194 = sand.u32 %s120, 1
        %s1195 = smul.addr %s1194, 256
        %s1196 = scalar_lea.vmem [#allocation3], %s1195
        %s1197 = sand.u32 %s148, 1
        %s1198 = scalar_lea.sflag [#allocation6], %s1197
        %s1199 = sand.u32 %s148, 1
        %s1200 = smul.addr %s1199, 256
        %s1201 = scalar_lea.vmem [#allocation5], %s1200
        // Predicated region
        $region41: #{tpu_custom_call.1} parent=31 // pred_check
          %p1202 = pneg %p130
        $region42: #{tpu_custom_call.1} parent=31 // pred_check_branch
          %1204 = sbr.rel (%p1202) target = $region44
        $region43: #{tpu_custom_call.1} parent=31 // pred_region
          %s1205 = smul.u32 32, %s26
          %s1207 = ssub.s32 4096, 4096
          %1208 = vsyncadd %s1193, %s1207
          %s1209 = smul.addr %s1205, 128
          %s1210 = scalar_lea.hbm %s3, %s1209
          %s1211 = sshll.u32 %s1196, 4
          %s1212 = int_to_ptr.vmem [resolvable:$true] %s1211
          %1217 = dma.vmem_to_hbm [thread:$0]  %s1212, 4096, %s1210, %s1193, 128, 128, 8
        $region44: #{tpu_custom_call.1} parent=31 // pred_fallthru
          _
        // Predicated region
        $region45: #{tpu_custom_call.1} parent=31 // pred_check
          %p1218 = pneg %p158
        $region46: #{tpu_custom_call.1} parent=31 // pred_check_branch
          %1220 = sbr.rel (%p1218) target = $region48
        $region47: #{tpu_custom_call.1} parent=31 // pred_region
          %s1221 = smul.u32 32, %s26
          %s1223 = ssub.s32 4096, 4096
          %1224 = vsyncadd %s1198, %s1223
          %s1225 = smul.addr %s1221, 3
          %s1226 = sadd.s32 %s27, %s1225
          %s1227 = smul.addr %s1226, 128
          %s1228 = scalar_lea.hbm %s4, %s1227
          %s1229 = sshll.u32 %s1201, 4
          %s1230 = int_to_ptr.vmem [resolvable:$true] %s1229
          %1235 = dma.vmem_to_hbm [thread:$0]  %s1230, 4096, %s1228, %s1198, 128, 384, 8
        $region48: #{tpu_custom_call.1} parent=31 // pred_fallthru
          _
      $region32: #{tpu_custom_call.1} parent=5 // pred_fallthru
        _
      %p1236 = scmp.le.s32.totalorder 2, %s17
      // Predicated region
      $region49: #{tpu_custom_call.1} parent=5 // pred_check
        %p1237 = pneg %p1236
      $region50: #{tpu_custom_call.1} parent=5 // pred_check_branch
        %1239 = sbr.rel (%p1237) target = $region52
      $region51: #{tpu_custom_call.1} parent=5 // pred_region
        %s1240 = ssub.s32 %s17, 2
        // Predicated region
        $region53: #{tpu_custom_call.1} parent=51 // pred_check
          %p1241 = pneg %p136
        $region54: #{tpu_custom_call.1} parent=51 // pred_check_branch
          %1243 = sbr.rel (%p1241) target = $region56
        $region55: #{tpu_custom_call.1} parent=51 // pred_region
          %s1244 = sand.u32 %s121, 1
          %s1245 = scalar_lea.sflag [#allocation4], %s1244
          %s1246 = sand.u32 %s121, 1
          %s1247 = smul.addr %s1246, 256
          %s1248 = scalar_lea.vmem [#allocation3], %s1247
          %1249 = dma.done %s1245, 4096
        $region56: #{tpu_custom_call.1} parent=51 // pred_fallthru
          _
        // Predicated region
        $region57: #{tpu_custom_call.1} parent=51 // pred_check
          %p1250 = pneg %p164
        $region58: #{tpu_custom_call.1} parent=51 // pred_check_branch
          %1252 = sbr.rel (%p1250) target = $region60
        $region59: #{tpu_custom_call.1} parent=51 // pred_region
          %s1253 = sand.u32 %s149, 1
          %s1254 = scalar_lea.sflag [#allocation6], %s1253
          %s1255 = sand.u32 %s149, 1
          %s1256 = smul.addr %s1255, 256
          %s1257 = scalar_lea.vmem [#allocation5], %s1256
          %1258 = dma.done %s1254, 4096
        $region60: #{tpu_custom_call.1} parent=51 // pred_fallthru
          _
      $region52: #{tpu_custom_call.1} parent=5 // pred_fallthru
        _
    $region6: #{tpu_custom_call.1} parent=1 // loop_footer
      %s21 = sadd.s32 1, %s17
    $region7: #{tpu_custom_call.1} parent=1 // loop_footer_branch
      %16 = sbr.rel target = $region3
    $region8: #{tpu_custom_call.1} parent=1 // loop_exit
      _
    %1259 = vsyncpa [#allocation4], 1
    %s1260 = scalar_lea.sflag [#allocation4], 1
    %1261 = vsyncpa %s1260, 1
    %1262 = vsyncpa [#allocation6], 1
    %s1263 = scalar_lea.sflag [#allocation6], 1
    %1264 = vsyncpa %s1263, 1

</llo_original>
